<compile_context>
chip_gen: v7x
topology: tpu7x:2x2x1
jax: 0.10.0
libtpu: 0.0.40
codegen_flags: <defaults>
</compile_context>

<pallas_src>
import functools

import jax
import jax.numpy as jnp
from jax import lax
from jax.experimental import pallas as pl
from jax.experimental.pallas import tpu as pltpu

# Safe on every generation: well under 64 MiB physical VMEM on v7x, and raises
# the 16/32 MiB default scoped limit on v5e/v6e so bigger tiles are allowed.
_VMEM_LIMIT_BYTES = 48 * 1024 * 1024


def _pick_tile(size, preferred, align):
    """Largest multiple of `align` that divides `size` and is <= preferred; else full dim."""
    if size <= preferred:
        return size
    t = (preferred // align) * align
    while t >= align:
        if size % t == 0:
            return t
        t -= align
    return size


# ---------------------------------------------------------------------------
# Tiled linear (y = x @ W_T), no bias (qkv_bias = proj_bias = False).
# ---------------------------------------------------------------------------

def _matmul_kernel(x_ref, w_ref, o_ref, acc_ref, *, compute_dtype):
    @pl.when(pl.program_id(2) == 0)
    def _():
        acc_ref[...] = jnp.zeros_like(acc_ref)

    x = x_ref[...]
    w = w_ref[...]
    if compute_dtype is not None:           # e.g. bf16 operands on v6e/v7x MXU
        x = x.astype(compute_dtype)
        w = w.astype(compute_dtype)
    acc_ref[...] += jnp.dot(x, w, preferred_element_type=jnp.float32)

    @pl.when(pl.program_id(2) == pl.num_programs(2) - 1)
    def _():
        o_ref[...] = acc_ref[...].astype(o_ref.dtype)


def pallas_linear(x2d, wT, *, tm=256, tn=256, tk=512, compute_dtype=None):
    """x2d: (R, Cin), wT: (Cin, Cout) (already transposed) -> (R, Cout)."""
    R, Cin = x2d.shape
    Cout = wT.shape[1]
    btm = _pick_tile(R, tm, 8)       # sublane dim of x / out
    btn = _pick_tile(Cout, tn, 128)  # lane dim of w / out
    btk = _pick_tile(Cin, tk, 128)   # lane dim of x, sublane dim of w
    grid = (R // btm, Cout // btn, Cin // btk)
    return pl.pallas_call(
        functools.partial(_matmul_kernel, compute_dtype=compute_dtype),
        out_shape=jax.ShapeDtypeStruct((R, Cout), x2d.dtype),
        grid=grid,
        in_specs=[
            pl.BlockSpec((btm, btk), lambda i, j, k: (i, k)),
            pl.BlockSpec((btk, btn), lambda i, j, k: (k, j)),
        ],
        out_specs=pl.BlockSpec((btm, btn), lambda i, j, k: (i, j)),
        scratch_shapes=[pltpu.VMEM((btm, btn), jnp.float32)],
        compiler_params=pltpu.CompilerParams(
            dimension_semantics=("parallel", "parallel", "arbitrary"),
            vmem_limit_bytes=_VMEM_LIMIT_BYTES),
    )(x2d, wT)


# ---------------------------------------------------------------------------
# Flash-style cross attention: heads packed per grid step, KV axis tiled.
# ---------------------------------------------------------------------------

def _make_flash_kernel(*, scale, with_mask, approx_recip, compute_dtype):
    def kernel(*refs):
        if with_mask:
            mask_ref, q_ref, k_ref, v_ref, o_ref, m_sc, l_sc, acc_sc = refs
        else:
            q_ref, k_ref, v_ref, o_ref, m_sc, l_sc, acc_sc = refs
            mask_ref = None

        ki = pl.program_id(2)

        @pl.when(ki == 0)
        def _():
            m_sc[...] = jnp.full_like(m_sc, -jnp.inf)
            l_sc[...] = jnp.zeros_like(l_sc)
            acc_sc[...] = jnp.zeros_like(acc_sc)

        # Scale q (the smallest operand) instead of the (H, tq, tkv) scores.
        q = q_ref[0] * scale                       # (tq, H, D)
        k = k_ref[0]                               # (tkv, H, D)
        v = v_ref[0]                               # (tkv, H, D)
        if compute_dtype is not None:
            q = q.astype(compute_dtype)
            k = k.astype(compute_dtype)
            v = v.astype(compute_dtype)

        # scores (H, tq, tkv): contract D, batch over H — no explicit k.T.
        s = lax.dot_general(
            q, k,
            dimension_numbers=(((2,), (2,)), ((1,), (1,))),
            preferred_element_type=jnp.float32)

        if mask_ref is not None:
            msk = mask_ref[0]                      # (tq, tkv) int8, nonzero == keep
            s = jnp.where(msk[None, :, :] != 0, s, jnp.float32(-1e30))

        m_prev = m_sc[...]                         # (H, tq, 1)
        m_new = jnp.maximum(m_prev, jnp.max(s, axis=-1, keepdims=True))
        alpha = jnp.exp(m_prev - m_new)
        p = jnp.exp(s - m_new)                     # (H, tq, tkv)
        l_sc[...] = alpha * l_sc[...] + jnp.sum(p, axis=-1, keepdims=True)

        # pv (H, tq, D): contract tkv, batch over H.
        pv = lax.dot_general(
            p.astype(v.dtype), v,
            dimension_numbers=(((2,), (0,)), ((0,), (1,))),
            preferred_element_type=jnp.float32)
        acc_sc[...] = alpha * acc_sc[...] + pv
        m_sc[...] = m_new

        @pl.when(ki == pl.num_programs(2) - 1)
        def _():
            inv_l = pl.reciprocal(l_sc[...], approx=approx_recip)   # (H, tq, 1)
            num_heads, _, head_dim = acc_sc.shape
            # Merge heads straight into the (tq, H*D) output block (the layout
            # the output projection consumes) — no wrapper transpose.
            for h in range(num_heads):
                o_ref[0, :, h * head_dim:(h + 1) * head_dim] = (
                    acc_sc[h] * inv_l[h]).astype(o_ref.dtype)

    return kernel


def pallas_cross_attention(q4, kv5, scale, mask=None, *, tq=128, tkv=256,
                           approx_recip=True, compute_dtype=None):
    """q4: (B, N, H, D); kv5: (B, M, 2, H, D); mask: optional (B, N, M) bool.

    Returns the merged-head attention output with shape (B, N, H*D).
    """
    B, N, H, D = q4.shape
    M = kv5.shape[1]
    C = H * D
    btq = _pick_tile(N, tq, 8)      # sublane dim of mask / output blocks
    btkv = _pick_tile(M, tkv, 128)  # lane dim of mask blocks
    grid = (B, N // btq, M // btkv)

    q_spec = pl.BlockSpec((1, btq, H, D), lambda b, qi, ki: (b, qi, 0, 0))
    k_spec = pl.BlockSpec((1, btkv, None, H, D), lambda b, qi, ki: (b, ki, 0, 0, 0))
    v_spec = pl.BlockSpec((1, btkv, None, H, D), lambda b, qi, ki: (b, ki, 1, 0, 0))
    out_spec = pl.BlockSpec((1, btq, C), lambda b, qi, ki: (b, qi, 0))
    scratch = [
        pltpu.VMEM((H, btq, 1), jnp.float32),   # running max m
        pltpu.VMEM((H, btq, 1), jnp.float32),   # running denom l
        pltpu.VMEM((H, btq, D), jnp.float32),   # running accumulator
    ]
    cparams = pltpu.CompilerParams(
        dimension_semantics=("parallel", "parallel", "arbitrary"),
        vmem_limit_bytes=_VMEM_LIMIT_BYTES)
    out_shape = jax.ShapeDtypeStruct((B, N, C), q4.dtype)

    kernel = _make_flash_kernel(scale=scale, with_mask=mask is not None,
                                approx_recip=approx_recip,
                                compute_dtype=compute_dtype)

    if mask is None:
        return pl.pallas_call(
            kernel, out_shape=out_shape, grid=grid,
            in_specs=[q_spec, k_spec, v_spec],
            out_specs=out_spec, scratch_shapes=scratch,
            compiler_params=cparams,
        )(q4, kv5, kv5)

    mask_i8 = mask.astype(jnp.int8)   # 4x less HBM traffic than int32
    mask_spec = pl.BlockSpec((1, btq, btkv), lambda b, qi, ki: (b, qi, ki))
    return pl.pallas_call(
        kernel, out_shape=out_shape, grid=grid,
        in_specs=[mask_spec, q_spec, k_spec, v_spec],
        out_specs=out_spec, scratch_shapes=scratch,
        compiler_params=cparams,
    )(mask_i8, q4, kv5, kv5)


# ---------------------------------------------------------------------------
# CrossAttention forward (no transposes / slices in the wrapper).
# ---------------------------------------------------------------------------

def init_cross_attention_params(key, dim, head_dim=64):
    num_heads = dim // head_dim
    k1, k2, k3 = jax.random.split(key, 3)
    std = 0.02
    # Weights stored pre-transposed to (in_features, out_features); torch stores
    # (out, in) and computes y = x @ W.T, so y = x @ W_T here — same math.
    # TODO(synk): qkv_bias / proj_bias variants (module defaults are False).
    return {
        "w_q_T": jax.random.normal(k1, (dim, num_heads * head_dim), jnp.float32) * std,
        "w_kv_T": jax.random.normal(k2, (dim, 2 * num_heads * head_dim), jnp.float32) * std,
        "w_out_T": jax.random.normal(k3, (num_heads * head_dim, dim), jnp.float32) * std,
        "num_heads": num_heads,
        "head_dim": head_dim,
        "scale": head_dim ** (-0.5),
    }


def cross_attention_forward(params, x, context, mask=None, *,
                            approx_recip=True, compute_dtype=None):
    B, N, C = x.shape
    _, M, _ = context.shape
    H, D = params["num_heads"], params["head_dim"]

    # q / kv projections (tiled Pallas matmuls). Reshapes below are free
    # (contiguous splits of the feature axis), no transposes anywhere.
    q = pallas_linear(x.reshape(B * N, C), params["w_q_T"],
                      compute_dtype=compute_dtype).reshape(B, N, H, D)
    kv = pallas_linear(context.reshape(B * M, C), params["w_kv_T"],
                       compute_dtype=compute_dtype).reshape(B, M, 2, H, D)

    # Flash-style attention reads q/kv in their projection layouts and emits
    # the merged-head (B, N, H*D) tensor ready for the output projection.
    o = pallas_cross_attention(q, kv, params["scale"], mask=mask,
                               approx_recip=approx_recip,
                               compute_dtype=compute_dtype)

    out = pallas_linear(o.reshape(B * N, H * D), params["w_out_T"],
                        compute_dtype=compute_dtype)
    return out.reshape(B, N, C)


# Pure-JAX reference for verification.
def cross_attention_ref(params, x, context, mask=None):
    B, N, C = x.shape
    _, M, _ = context.shape
    H, D = params["num_heads"], params["head_dim"]
    q = (x @ params["w_q_T"]).reshape(B, N, H, D).transpose(0, 2, 1, 3)
    kv = (context @ params["w_kv_T"]).reshape(B, M, 2, H, D)
    k = kv[:, :, 0].transpose(0, 2, 1, 3)
    v = kv[:, :, 1].transpose(0, 2, 1, 3)
    attn = jnp.einsum("bhnd,bhmd->bhnm", q, k) * params["scale"]
    if mask is not None:
        attn = jnp.where(mask[:, None, :, :], attn, -jnp.inf)
    attn = jax.nn.softmax(attn, axis=-1)
    o = jnp.einsum("bhnm,bhmd->bhnd", attn, v)
    o = o.transpose(0, 2, 1, 3).reshape(B, N, H * D)
    return (o @ params["w_out_T"]).reshape(B, N, C)


if __name__ == "__main__":
    key = jax.random.PRNGKey(0)
    k_param, k_x, k_ctx, k_mask = jax.random.split(key, 4)

    B, N, M, dim, head_dim = 2, 8, 16, 32, 8   # num_heads = 4
    params = init_cross_attention_params(k_param, dim, head_dim=head_dim)

    x = jax.random.normal(k_x, (B, N, dim), jnp.float32)
    context = jax.random.normal(k_ctx, (B, M, dim), jnp.float32)
    # Boolean mask (B, N, M), guaranteed at least one valid key per query.
    mask = jax.random.bernoulli(k_mask, 0.8, (B, N, M)).at[:, :, 0].set(True)

    out = jax.block_until_ready(cross_attention_forward(params, x, context, mask=None))
    out_masked = jax.block_until_ready(
        cross_attention_forward(params, x, context, mask=mask))

    ref = cross_attention_ref(params, x, context, mask=None)
    ref_masked = cross_attention_ref(params, x, context, mask=mask)

    # Tolerance accounts for the approx (EUP) reciprocal in the softmax denom.
    assert jnp.allclose(out, ref, atol=2e-3, rtol=2e-2), float(jnp.max(jnp.abs(out - ref)))
    assert jnp.allclose(out_masked, ref_masked, atol=2e-3, rtol=2e-2), \
        float(jnp.max(jnp.abs(out_masked - ref_masked)))

    print("KERNEL_OK")
</pallas_src>

<mosaic_0001>
module attributes {stable_mosaic.version = 11 : i64} {
  func.func @_matmul_kernel(%arg0: i32, %arg1: i32, %arg2: i32, %arg3: memref<16x32xf32, #tpu.memory_space<vmem>>, %arg4: memref<32x32xf32, #tpu.memory_space<vmem>>, %arg5: memref<16x32xf32, #tpu.memory_space<vmem>>, %arg6: memref<16x32xf32, #tpu.memory_space<vmem>>) attributes {dimension_semantics = [#tpu.dimension_semantics<parallel>, #tpu.dimension_semantics<parallel>, #tpu.dimension_semantics<arbitrary>], iteration_bounds = array<i64: 1, 1, 1>, scalar_prefetch = 0 : i64, scratch_operands = 1 : i64, tpu.core_type = #tpu.core_type<tc>, window_params = [{transform_indices = @transform_0, window_bounds = array<i64: 16, 32>}, {transform_indices = @transform_1, window_bounds = array<i64: 32, 32>}, {transform_indices = @transform_2, window_bounds = array<i64: 16, 32>}]} {
    %c0_i32 = arith.constant 0 : i32
    %0 = arith.cmpi eq, %arg2, %c0_i32 : i32
    %1 = arith.extui %0 : i1 to i32
    %c0_i32_0 = arith.constant 0 : i32
    %2 = arith.cmpi ne, %1, %c0_i32_0 : i32
    scf.if %2 {
      %cst_10 = arith.constant 0.000000e+00 : f32
      %12 = vector.broadcast %cst_10 : f32 to vector<16x32xf32>
      %c0_11 = arith.constant 0 : index
      %c0_12 = arith.constant 0 : index
      %13 = vector.load %arg6[%c0_11, %c0_12] : memref<16x32xf32, #tpu.memory_space<vmem>>, vector<16x32xf32>
      tpu.vector_store %arg6[%c0_11, %c0_12], %12 {strides = array<i32>} : memref<16x32xf32, #tpu.memory_space<vmem>>, vector<16x32xf32>,
    } else {
    }
    %c0 = arith.constant 0 : index
    %c0_1 = arith.constant 0 : index
    %3 = vector.load %arg3[%c0, %c0_1] : memref<16x32xf32, #tpu.memory_space<vmem>>, vector<16x32xf32>
    %c0_2 = arith.constant 0 : index
    %c0_3 = arith.constant 0 : index
    %4 = vector.load %arg4[%c0_2, %c0_3] : memref<32x32xf32, #tpu.memory_space<vmem>>, vector<32x32xf32>
    %c0_4 = arith.constant 0 : index
    %c0_5 = arith.constant 0 : index
    %5 = vector.load %arg6[%c0_4, %c0_5] : memref<16x32xf32, #tpu.memory_space<vmem>>, vector<16x32xf32>
    %cst = arith.constant dense<0.000000e+00> : vector<16x32xf32>
    %6 = tpu.matmul %3, %4, %cst {dimension_numbers = #tpu.dot_dimension_numbers<[1], [0], [0], [1], [0, 0, 1, 1], [], []>} : vector<16x32xf32>, vector<32x32xf32>, vector<16x32xf32> -> vector<16x32xf32>
    %7 = arith.addf %5, %6 : vector<16x32xf32>
    %c0_6 = arith.constant 0 : index
    %c0_7 = arith.constant 0 : index
    %8 = vector.load %arg6[%c0_6, %c0_7] : memref<16x32xf32, #tpu.memory_space<vmem>>, vector<16x32xf32>
    tpu.vector_store %arg6[%c0_6, %c0_7], %7 {strides = array<i32>} : memref<16x32xf32, #tpu.memory_space<vmem>>, vector<16x32xf32>,
    %c0_i32_8 = arith.constant 0 : i32
    %9 = arith.cmpi eq, %arg2, %c0_i32_8 : i32
    %10 = arith.extui %9 : i1 to i32
    %c0_i32_9 = arith.constant 0 : i32
    %11 = arith.cmpi ne, %10, %c0_i32_9 : i32
    scf.if %11 {
      %c0_10 = arith.constant 0 : index
      %c0_11 = arith.constant 0 : index
      %12 = vector.load %arg6[%c0_10, %c0_11] : memref<16x32xf32, #tpu.memory_space<vmem>>, vector<16x32xf32>
      %c0_12 = arith.constant 0 : index
      %c0_13 = arith.constant 0 : index
      %13 = vector.load %arg5[%c0_12, %c0_13] : memref<16x32xf32, #tpu.memory_space<vmem>>, vector<16x32xf32>
      tpu.vector_store %arg5[%c0_12, %c0_13], %12 {strides = array<i32>} : memref<16x32xf32, #tpu.memory_space<vmem>>, vector<16x32xf32>,
    } else {
    }
    return
  }
  func.func @transform_0(%arg0: i32, %arg1: i32, %arg2: i32) -> (i32, i32) {
    %c0_i32 = arith.constant 0 : i32
    return %arg0, %arg2 : i32, i32
  }
  func.func @transform_1(%arg0: i32, %arg1: i32, %arg2: i32) -> (i32, i32) {
    %c0_i32 = arith.constant 0 : i32
    return %arg2, %arg1 : i32, i32
  }
  func.func @transform_2(%arg0: i32, %arg1: i32, %arg2: i32) -> (i32, i32) {
    %c0_i32 = arith.constant 0 : i32
    return %arg0, %arg1 : i32, i32
  }
}

</mosaic_0001>

<llo_original>
// kernel: tpu_custom_call.1
$region0: #{tpu_custom_call.1}
  #allocation0 [shape = 'u32[]', space=smem, size = 0x4, offset = 0x4, fixed_abs, tag = 'smem constant byte address 0x4 - core index']
  #allocation1 [shape = 'u32[144,128]{1,0:T(1,128)}', space=vmem, size = 0x12000, scoped, tag = 'internal scratch']
  #allocation2 [shape = 'f32[16,32]{1,0:T(8,128)}', space=vmem, size = 0x2000, scoped, tag = 'scratch operand']
  %s0 = inlined_call_operand.hbm [shape: f32[16,32], index: 0, kind: input, shape index: {}]
  %s1 = inlined_call_operand.hbm [shape: f32[32,32], index: 1, kind: input, shape index: {}]
  %s2 = inlined_call_operand.hbm [shape: f32[16,32], index: 2, kind: output, shape index: {}]
  %s3 = sld [smem:[#allocation0]]
  $region34: #{tpu_custom_call.1} parent=0
    _
  %s5 = ssub.s32 1, %s3
  %s6 = scalar_select 0, %s5, %s3
  $region1: #{tpu_custom_call.1} parent=0
    #allocation3 [shape = 'u8[8192]{0}', space=vmem, size = 0x2000, scoped, tag = 'input window, operand 0, single buffered']
    #allocation4 [shape = 's32[1]{0}', space=sflag, size = 0x4, scoped, tag = 'scoped memory for tpu_custom_call.1']
    #allocation5 [shape = 's32[1]{0}', space=sflag, size = 0x4, scoped, tag = 'scoped memory for tpu_custom_call.1']
    #allocation6 [shape = 'u8[16384]{0}', space=vmem, size = 0x4000, scoped, tag = 'input window, operand 1, single buffered']
    #allocation7 [shape = 's32[1]{0}', space=sflag, size = 0x4, scoped, tag = 'scoped memory for tpu_custom_call.1']
    #allocation8 [shape = 'u8[8192]{0}', space=vmem, size = 0x2000, scoped, tag = 'output window, operand 0, single buffered']
    %7 = vsyncpa [#allocation4], 0
    %8 = vsyncpa [#allocation7], 0
    %9 = vsyncpa [#allocation5], 0
    // Predicated region
    $region2: #{tpu_custom_call.1} parent=1 // pred_check
      _
    $region3: #{tpu_custom_call.1} parent=1 // pred_check_branch
      %11 = sbr.rel (0) target = $region5
    $region4: #{tpu_custom_call.1} parent=1 // pred_region
      %s13 = ssub.s32 256, 256
      %14 = vsyncadd [#allocation4], %s13
      %s15 = sshll.u32 [#allocation3], 4
      %s16 = int_to_ptr.vmem [resolvable:$true] %s15
      %21 = dma.hbm_to_vmem [thread:$0]  %s0, 256, %s16, [#allocation4], 128, 128, 8
    $region5: #{tpu_custom_call.1} parent=1 // pred_fallthru
      _
    // Predicated region
    $region6: #{tpu_custom_call.1} parent=1 // pred_check
      _
    $region7: #{tpu_custom_call.1} parent=1 // pred_check_branch
      %23 = sbr.rel (0) target = $region9
    $region8: #{tpu_custom_call.1} parent=1 // pred_region
      %s25 = ssub.s32 512, 512
      %26 = vsyncadd [#allocation7], %s25
      %s27 = sshll.u32 [#allocation6], 4
      %s28 = int_to_ptr.vmem [resolvable:$true] %s27
      %33 = dma.hbm_to_vmem [thread:$0]  %s1, 512, %s28, [#allocation7], 128, 128, 8
    $region9: #{tpu_custom_call.1} parent=1 // pred_fallthru
      _
    // Predicated region
    $region10: #{tpu_custom_call.1} parent=1 // pred_check
      _
    $region11: #{tpu_custom_call.1} parent=1 // pred_check_branch
      %35 = sbr.rel (0) target = $region13
    $region12: #{tpu_custom_call.1} parent=1 // pred_region
      %36 = dma.done [#allocation4], 256
    $region13: #{tpu_custom_call.1} parent=1 // pred_fallthru
      _
    // Predicated region
    $region14: #{tpu_custom_call.1} parent=1 // pred_check
      _
    $region15: #{tpu_custom_call.1} parent=1 // pred_check_branch
      %38 = sbr.rel (0) target = $region17
    $region16: #{tpu_custom_call.1} parent=1 // pred_region
      %39 = dma.done [#allocation7], 512
    $region17: #{tpu_custom_call.1} parent=1 // pred_fallthru
      _
    %p40 = scmp.eq.s32.totalorder 0, 0
    // Predicated region
    $region18: #{tpu_custom_call.1} parent=1 // pred_check
      %p41 = pneg %p40
    $region19: #{tpu_custom_call.1} parent=1 // pred_check_branch
      %43 = sbr.rel (%p41) target = $region21
    $region20: #{tpu_custom_call.1} parent=1 // pred_region
      %vm44 = vcmask 261120
      %45 = vst.msk [vmem:[#allocation2] sm:$0xff] %vm44, 0.0
      %46 = vst.msk [vmem:[#allocation2 + $0x8] sm:$0xff] %vm44, 0.0
    $region21: #{tpu_custom_call.1} parent=1 // pred_fallthru
      _
    %v47 = vld [vmem:[#allocation3] sm:$0xff]
    %v48 = vld [vmem:[#allocation3 + $0x8] sm:$0xff]
    %v49 = vld [vmem:[#allocation6] sm:$0xff]
    %v50 = vld [vmem:[#allocation6 + $0x8] sm:$0xff]
    %v51 = vld [vmem:[#allocation6 + $0x10] sm:$0xff]
    %v52 = vld [vmem:[#allocation6 + $0x18] sm:$0xff]
    %v53 = vld [vmem:[#allocation2] sm:$0xff]
    %v54 = vld [vmem:[#allocation2 + $0x8] sm:$0xff]
    %vm55 = vcmask 261120
    %v57 = vsel %vm55, %v47, 0
    %v60 = vsel %vm55, %v48, 0
    %62 = vmatprep.subr.mxu0 0.0
    %63 = vmatpush1.msra.mxu0 %v49
    %64 = vmatprep.subr.mxu0 0.0
    %65 = vmatpush1.msra.mxu0 %v50
    %66 = vmatprep.subr.mxu0 0.0
    %67 = vmatpush1.msra.mxu0 %v51
    %68 = vmatprep.subr.mxu0 0.0
    %69 = vmatpush1.msra.mxu0 %v52
    %70 = vmatprep.subr.mxu0 0.0
    %71 = vmatpush1.msra.mxu0 0.0
    %72 = vmatprep.subr.mxu0 0.0
    %73 = vmatpush1.msra.mxu0 0.0
    %74 = vmatprep.subr.mxu0 0.0
    %75 = vmatpush1.msra.mxu0 0.0
    %76 = vmatprep.subr.mxu0 0.0
    %77 = vmatpush1.msra.mxu0 0.0
    %78 = vmatprep.subr.mxu0 0.0
    %79 = vmatpush1.msra.mxu0 0.0
    %80 = vmatprep.subr.mxu0 0.0
    %81 = vmatpush1.msra.mxu0 0.0
    %82 = vmatprep.subr.mxu0 0.0
    %83 = vmatpush1.msra.mxu0 0.0
    %84 = vmatprep.subr.mxu0 0.0
    %85 = vmatpush1.msra.mxu0 0.0
    %86 = vmatprep.subr.mxu0 0.0
    %87 = vmatpush1.msra.mxu0 0.0
    %88 = vmatprep.subr.mxu0 0.0
    %89 = vmatpush1.msra.mxu0 0.0
    %90 = vmatprep.subr.mxu0 0.0
    %91 = vmatpush1.msra.mxu0 0.0
    %92 = vmatprep.subr.mxu0 0.0
    %93 = vmatpush1.msra.mxu0 0.0
    %94 = vmatprep.subr.mxu0 0.0
    %95 = vmatpush1.msra.mxu0 0.0
    %96 = vmatprep.subr.mxu0 0.0
    %97 = vmatpush1.msra.mxu0 0.0
    %98 = vmatprep.subr.mxu0 0.0
    %99 = vmatpush1.msra.mxu0 0.0
    %100 = vmatprep.subr.mxu0 0.0
    %101 = vmatpush1.msra.mxu0 0.0
    %102 = vmatprep.subr.mxu0 0.0
    %103 = vmatpush1.msra.mxu0 0.0
    %104 = vmatprep.subr.mxu0 0.0
    %105 = vmatpush1.msra.mxu0 0.0
    %106 = vmatprep.subr.mxu0 0.0
    %107 = vmatpush1.msra.mxu0 0.0
    %108 = vmatprep.subr.mxu0 0.0
    %109 = vmatpush1.msra.mxu0 0.0
    %110 = vmatprep.subr.mxu0 0.0
    %111 = vmatpush1.msra.mxu0 0.0
    %112 = vmatprep.subr.mxu0 0.0
    %113 = vmatpush1.msra.mxu0 0.0
    %114 = vmatprep.subr.mxu0 0.0
    %115 = vmatpush1.msra.mxu0 0.0
    %116 = vmatprep.subr.mxu0 0.0
    %117 = vmatpush1.msra.mxu0 0.0
    %118 = vmatprep.subr.mxu0 0.0
    %119 = vmatpush1.msra.mxu0 0.0
    %120 = vmatprep.subr.mxu0 0.0
    %121 = vmatpush1.msra.mxu0 0.0
    %122 = vmatprep.subr.mxu0 0.0
    %123 = vmatpush1.msra.mxu0 0.0
    %124 = vmatprep.subr.mxu0 0.0
    %125 = vmatpush1.msra.mxu0 0.0
    %126 = vmatprep.mubr.f32.mxu0 0.0
    %127 = vmatmul.mubr.f32.gmra.mrb[0].mxu0 %v57
    %v128 = vpop.f32.mrb[0].mxu0
    %v129 = vadd.f32 0.0, %v128
    %v130 = vpop.f32.mrb[0].mxu0
    %131 = vmatprep.mubr.f32.mxu0 0.0
    %132 = vmatmul.mubr.f32.gmra.mrb[0].mxu0 %v60
    %v133 = vpop.f32.mrb[0].mxu0
    %v134 = vadd.f32 0.0, %v133
    %v135 = vpop.f32.mrb[0].mxu0
    %136 = vdwg.mxu0
    %v137 = vadd.f32 %v53, %v129
    %v138 = vadd.f32 %v54, %v134
    %139 = vst.msk [vmem:[#allocation2] sm:$0xff] %vm55, %v137
    %140 = vst.msk [vmem:[#allocation2 + $0x8] sm:$0xff] %vm55, %v138
    // Predicated region
    $region22: #{tpu_custom_call.1} parent=1 // pred_check
      %p141 = pneg %p40
    $region23: #{tpu_custom_call.1} parent=1 // pred_check_branch
      %143 = sbr.rel (%p141) target = $region25
    $region24: #{tpu_custom_call.1} parent=1 // pred_region
      %v144 = vld [vmem:[#allocation2] sm:$0xff]
      %v145 = vld [vmem:[#allocation2 + $0x8] sm:$0xff]
      %146 = vst.msk [vmem:[#allocation8] sm:$0xff] %vm55, %v144
      %147 = vst.msk [vmem:[#allocation8 + $0x8] sm:$0xff] %vm55, %v145
    $region25: #{tpu_custom_call.1} parent=1 // pred_fallthru
      _
    // Predicated region
    $region26: #{tpu_custom_call.1} parent=1 // pred_check
      _
    $region27: #{tpu_custom_call.1} parent=1 // pred_check_branch
      %149 = sbr.rel (0) target = $region29
    $region28: #{tpu_custom_call.1} parent=1 // pred_region
      %s151 = ssub.s32 256, 256
      %152 = vsyncadd [#allocation5], %s151
      %s153 = sshll.u32 [#allocation8], 4
      %s154 = int_to_ptr.vmem [resolvable:$true] %s153
      %159 = dma.vmem_to_hbm [thread:$0]  %s154, 256, %s2, [#allocation5], 128, 128, 8
    $region29: #{tpu_custom_call.1} parent=1 // pred_fallthru
      _
    // Predicated region
    $region30: #{tpu_custom_call.1} parent=1 // pred_check
      _
    $region31: #{tpu_custom_call.1} parent=1 // pred_check_branch
      %161 = sbr.rel (0) target = $region33
    $region32: #{tpu_custom_call.1} parent=1 // pred_region
      %162 = dma.done [#allocation5], 256
    $region33: #{tpu_custom_call.1} parent=1 // pred_fallthru
      _
    %163 = vsyncpa [#allocation4], 1
    %164 = vsyncpa [#allocation7], 1
    %165 = vsyncpa [#allocation5], 1

</llo_original>
